<compile_context>
chip_gen: v5e
topology: v5e:2x2
jax: 0.10.0
libtpu: 0.0.40
codegen_flags: <defaults>
</compile_context>

<pallas_src>
import math

import jax
import jax.numpy as jnp
from jax.experimental import pallas as pl
from jax.experimental.pallas import tpu as pltpu


def _round_up(x: int, m: int) -> int:
    return ((x + m - 1) // m) * m


def _cdiv(a: int, b: int) -> int:
    return -(-a // b)


def _relationnet_kernel(x_ref, w1_ref, b1_ref, w2_ref, b2_ref, o_ref):
    # fc1 on the MXU: cast the f32 x tile to bf16 in-kernel (cheap: ~input_dim/128
    # vregs per 8 rows), accumulate in f32.
    x = x_ref[...].astype(jnp.bfloat16)                          # (tile_n, input_dim)
    h = jnp.dot(x, w1_ref[...], preferred_element_type=jnp.float32)  # (tile_n, Hpad) f32
    h = jnp.maximum(h + b1_ref[...], 0.0)                        # bias + ReLU (VPU, f32)

    # fc2 as VPU multiply by the resident (1, Hpad) w2 row + lane-sum reduction
    # (XLU); padded hidden columns are zero in both b1 and w2, so they are inert.
    y = jnp.sum(h * w2_ref[...], axis=-1, keepdims=True)         # (tile_n, 1) f32

    # Lane-dense epilogue: relayout the column to (1, tile_n//128, 128), then do
    # the scalar bias + sigmoid on the dense shape and store with full-lane vst.
    y = y.reshape(o_ref.shape)                                   # (1, tile_n//128, 128)
    o_ref[...] = jax.nn.sigmoid(y + b2_ref[0, 0]).astype(o_ref.dtype)


def _pick_tile_n(n: int, tile_n: int) -> int:
    # Multiple of 128 (needed for the dense output reshape), clamped to [128, 4096].
    tile_n = max(128, (min(int(tile_n), 4096) // 128) * 128)
    if n > 128:
        # Guarantee >= 2 grid steps when possible so the "parallel" grid axis can
        # shard across both TensorCores on v7x (no-op on single-TC v5e/v6e).
        tile_n = min(tile_n, _round_up(_cdiv(n, 2), 128))
    return tile_n


def relation_net_forward(x, w1, b1, w2, b2, *, tile_n=1024):
    """x: (N, input_dim) f32; w1: (input_dim, 400); b1: (1, 400); w2: (400, 1); b2: (1, 1).

    Weights are stored transposed relative to PyTorch ((in, out)) so the kernel
    computes plain x @ W + b.
    """
    n, input_dim = x.shape
    hidden = w1.shape[1]
    hidden_pad = _round_up(hidden, 128)                          # 400 -> 512

    # One-time (tiny) weight prep: pad the hidden dim, cast the fc1 weight to bf16
    # for the MXU, and lay w2 out as a (1, hidden_pad) row.  No passes over x.
    w1p = jnp.pad(w1, ((0, 0), (0, hidden_pad - hidden))).astype(jnp.bfloat16)
    b1p = jnp.pad(b1.reshape(1, hidden),
                  ((0, 0), (0, hidden_pad - hidden))).astype(jnp.float32)
    w2p = jnp.pad(w2.reshape(hidden, 1),
                  ((0, hidden_pad - hidden), (0, 0))).reshape(1, hidden_pad).astype(jnp.float32)
    b2p = b2.reshape(1, 1).astype(jnp.float32)                   # SMEM scalar

    tile_n = _pick_tile_n(n, tile_n)
    num_blocks = _cdiv(n, tile_n)                                # edge block clamped by Pallas
    g = tile_n // 128

    out = pl.pallas_call(
        _relationnet_kernel,
        out_shape=jax.ShapeDtypeStruct((num_blocks, g, 128), jnp.float32),
        grid_spec=pltpu.PrefetchScalarGridSpec(
            num_scalar_prefetch=0,
            grid=(num_blocks,),
            in_specs=[
                pl.BlockSpec((tile_n, input_dim), lambda i: (i, 0)),        # x tile (f32)
                pl.BlockSpec((input_dim, hidden_pad), lambda i: (0, 0)),    # w1 resident
                pl.BlockSpec((1, hidden_pad), lambda i: (0, 0)),            # b1 resident
                pl.BlockSpec((1, hidden_pad), lambda i: (0, 0)),            # w2 row resident
                pl.BlockSpec(memory_space=pltpu.MemorySpace.SMEM),          # b2 scalar
            ],
            out_specs=pl.BlockSpec((1, g, 128), lambda i: (i, 0, 0)),       # lane-dense out
        ),
        compiler_params=pltpu.CompilerParams(
            dimension_semantics=("parallel",),
            vmem_limit_bytes=32 * 1024 * 1024,
        ),
    )(x, w1p, b1p, w2p, b2p)

    # Dense (num_blocks, g, 128) -> (N, 1); rows beyond n (edge-block padding) dropped.
    return out.reshape(-1, 1)[:n]


def xavier_uniform(key, fan_in, fan_out):
    """Matches nn.init.xavier_uniform_ bounds; returned as (fan_in, fan_out) = W^T."""
    bound = math.sqrt(6.0 / (fan_in + fan_out))
    return jax.random.uniform(key, (fan_in, fan_out), jnp.float32, -bound, bound)


def linear_bias_init(key, fan_in, fan_out):
    """PyTorch default Linear bias init: U(-1/sqrt(fan_in), 1/sqrt(fan_in))."""
    bound = 1.0 / math.sqrt(fan_in)
    return jax.random.uniform(key, (1, fan_out), jnp.float32, -bound, bound)


if __name__ == "__main__":
    # args.img_outDIM = 32, args.att_outDIM = 32  -> input_dim = 64
    IMG_OUT_DIM = 32
    ATT_OUT_DIM = 32
    INPUT_DIM = IMG_OUT_DIM + ATT_OUT_DIM
    HIDDEN = 400
    N = 300        # not a tile multiple on purpose (exercises the clamped edge block)
    TILE_N = 128   # small tile for the demo so the multi-step grid path is exercised

    key = jax.random.PRNGKey(0)
    k_x, k_w1, k_b1, k_w2, k_b2 = jax.random.split(key, 5)

    x = jax.random.normal(k_x, (N, INPUT_DIM), jnp.float32)
    w1 = xavier_uniform(k_w1, INPUT_DIM, HIDDEN)
    b1 = linear_bias_init(k_b1, INPUT_DIM, HIDDEN)
    w2 = xavier_uniform(k_w2, HIDDEN, 1)
    b2 = linear_bias_init(k_b2, HIDDEN, 1)

    out = relation_net_forward(x, w1, b1, w2, b2, tile_n=TILE_N)
    out = jax.block_until_ready(out)

    # Pure-JAX f32 reference (kernel uses bf16 MXU operands for fc1 with f32
    # accumulation; fc2/epilogue are f32, so 2e-2 is a comfortable bound).
    ref = jax.nn.sigmoid(jnp.maximum(x @ w1 + b1, 0.0) @ w2 + b2)
    assert out.shape == (N, 1)
    assert jnp.allclose(out, ref, atol=2e-2, rtol=0.0), float(jnp.max(jnp.abs(out - ref)))

    print("KERNEL_OK")
</pallas_src>

<mosaic_0001>
module attributes {stable_mosaic.version = 11 : i64} {
  func.func @_relationnet_kernel(%arg0: i32, %arg1: memref<128x64xf32, #tpu.memory_space<vmem>>, %arg2: memref<64x512xbf16, #tpu.memory_space<vmem>>, %arg3: memref<1x512xf32, #tpu.memory_space<vmem>>, %arg4: memref<1x512xf32, #tpu.memory_space<vmem>>, %arg5: memref<1x1xf32, #tpu.memory_space<smem>>, %arg6: memref<1x1x128xf32, #tpu.memory_space<vmem>>) attributes {dimension_semantics = [#tpu.dimension_semantics<parallel>], iteration_bounds = array<i64: 3>, scalar_prefetch = 0 : i64, scratch_operands = 0 : i64, tpu.core_type = #tpu.core_type<tc>, window_params = [{transform_indices = @transform_0, window_bounds = array<i64: 128, 64>}, {pipeline_mode = #tpu.pipeline_mode<synchronous>, transform_indices = @transform_1, window_bounds = array<i64: 64, 512>}, {pipeline_mode = #tpu.pipeline_mode<synchronous>, transform_indices = @transform_2, window_bounds = array<i64: 1, 512>}, {pipeline_mode = #tpu.pipeline_mode<synchronous>, transform_indices = @transform_3, window_bounds = array<i64: 1, 512>}, {transform_indices = @transform_4, window_bounds = array<i64: 1, 1>}, {transform_indices = @transform_5, window_bounds = array<i64: 1, 1, 128>}]} {
    %c0 = arith.constant 0 : index
    %c0_0 = arith.constant 0 : index
    %0 = vector.load %arg1[%c0, %c0_0] : memref<128x64xf32, #tpu.memory_space<vmem>>, vector<128x64xf32>
    %1 = arith.truncf %0 : vector<128x64xf32> to vector<128x64xbf16>
    %c0_1 = arith.constant 0 : index
    %c0_2 = arith.constant 0 : index
    %2 = vector.load %arg2[%c0_1, %c0_2] : memref<64x512xbf16, #tpu.memory_space<vmem>>, vector<64x512xbf16>
    %cst = arith.constant dense<0.000000e+00> : vector<128x512xf32>
    %3 = tpu.matmul %1, %2, %cst {dimension_numbers = #tpu.dot_dimension_numbers<[1], [0], [0], [1], [0, 0, 1, 1], [], []>} : vector<128x64xbf16>, vector<64x512xbf16>, vector<128x512xf32> -> vector<128x512xf32>
    %c0_3 = arith.constant 0 : index
    %c0_4 = arith.constant 0 : index
    %4 = vector.load %arg3[%c0_3, %c0_4] : memref<1x512xf32, #tpu.memory_space<vmem>>, vector<1x512xf32>
    %5 = vector.broadcast %4 : vector<1x512xf32> to vector<128x512xf32>
    %6 = arith.addf %3, %5 : vector<128x512xf32>
    %cst_5 = arith.constant 0.000000e+00 : f32
    %7 = vector.broadcast %cst_5 : f32 to vector<128x512xf32>
    %8 = arith.maximumf %6, %7 : vector<128x512xf32>
    %c0_6 = arith.constant 0 : index
    %c0_7 = arith.constant 0 : index
    %9 = vector.load %arg4[%c0_6, %c0_7] : memref<1x512xf32, #tpu.memory_space<vmem>>, vector<1x512xf32>
    %10 = vector.broadcast %9 : vector<1x512xf32> to vector<128x512xf32>
    %11 = arith.mulf %8, %10 : vector<128x512xf32>
    %cst_8 = arith.constant dense<0.000000e+00> : vector<128xf32>
    %12 = vector.multi_reduction <add>, %11, %cst_8 [1] : vector<128x512xf32> to vector<128xf32>
    %13 = vector.shape_cast %12 : vector<128xf32> to vector<128x1xf32>
    %14 = vector.shape_cast %13 : vector<128x1xf32> to vector<1x1x128xf32>
    %c0_9 = arith.constant 0 : index
    %c0_10 = arith.constant 0 : index
    %15 = memref.load %arg5[%c0_9, %c0_10] : memref<1x1xf32, #tpu.memory_space<smem>>
    %16 = vector.broadcast %15 : f32 to vector<1x1x128xf32>
    %17 = arith.addf %14, %16 : vector<1x1x128xf32>
    %18 = arith.negf %17 : vector<1x1x128xf32>
    %19 = math.exp %18 : vector<1x1x128xf32>
    %cst_11 = arith.constant 1.000000e+00 : f32
    %20 = vector.broadcast %cst_11 : f32 to vector<1x1x128xf32>
    %21 = arith.addf %20, %19 : vector<1x1x128xf32>
    %22 = arith.divf %20, %21 : vector<1x1x128xf32>
    %c0_12 = arith.constant 0 : index
    %c0_13 = arith.constant 0 : index
    %c0_14 = arith.constant 0 : index
    %23 = vector.load %arg6[%c0_12, %c0_13, %c0_14] : memref<1x1x128xf32, #tpu.memory_space<vmem>>, vector<1x1x128xf32>
    tpu.vector_store %arg6[%c0_12, %c0_13, %c0_14], %22 {strides = array<i32>} : memref<1x1x128xf32, #tpu.memory_space<vmem>>, vector<1x1x128xf32>,
    return
  }
  func.func @transform_0(%arg0: i32) -> (i32, i32) {
    %c0_i32 = arith.constant 0 : i32
    %c0_i32_0 = arith.constant 0 : i32
    return %arg0, %c0_i32 : i32, i32
  }
  func.func @transform_1(%arg0: i32) -> (i32, i32) {
    %c0_i32 = arith.constant 0 : i32
    %c0_i32_0 = arith.constant 0 : i32
    %c0_i32_1 = arith.constant 0 : i32
    return %c0_i32, %c0_i32_0 : i32, i32
  }
  func.func @transform_2(%arg0: i32) -> (i32, i32) {
    %c0_i32 = arith.constant 0 : i32
    %c0_i32_0 = arith.constant 0 : i32
    %c0_i32_1 = arith.constant 0 : i32
    return %c0_i32, %c0_i32_0 : i32, i32
  }
  func.func @transform_3(%arg0: i32) -> (i32, i32) {
    %c0_i32 = arith.constant 0 : i32
    %c0_i32_0 = arith.constant 0 : i32
    %c0_i32_1 = arith.constant 0 : i32
    return %c0_i32, %c0_i32_0 : i32, i32
  }
  func.func @transform_4(%arg0: i32) -> (i32, i32) {
    %c0_i32 = arith.constant 0 : i32
    %c0_i32_0 = arith.constant 0 : i32
    %c0_i32_1 = arith.constant 0 : i32
    return %c0_i32, %c0_i32_0 : i32, i32
  }
  func.func @transform_5(%arg0: i32) -> (i32, i32, i32) {
    %c0_i32 = arith.constant 0 : i32
    %c0_i32_0 = arith.constant 0 : i32
    %c0_i32_1 = arith.constant 0 : i32
    return %arg0, %c0_i32, %c0_i32_0 : i32, i32, i32
  }
}

</mosaic_0001>

<llo_original>
// kernel: tpu_custom_call.1
$region0: #{tpu_custom_call.1}
  #allocation0 [shape = 'u32[]', space=smem, size = 0x4, offset = 0x4, fixed_abs, tag = 'smem constant byte address 0x4 - core index']
  #allocation1 [shape = 'u32[72,128]{1,0:T(1,128)}', space=vmem, size = 0x9000, scoped, tag = 'internal scratch']
  #allocation2 [shape = 'f32[1,1]{1,0:T(1,128)S(6)}', space=smem, size = 0x200, scoped, tag = 'scoped memory for tpu_custom_call.1']
  %s0 = inlined_call_operand.vmem [shape: f32[300,64], index: 0, kind: input, shape index: {}]
  %s1 = inlined_call_operand.vmem [shape: bf16[64,512], index: 1, kind: input, shape index: {}]
  %s2 = inlined_call_operand.vmem [shape: f32[1,512], index: 2, kind: input, shape index: {}]
  %s3 = inlined_call_operand.vmem [shape: f32[1,512], index: 3, kind: input, shape index: {}]
  %s4 = inlined_call_operand.<no memory space> [shape: f32[1,1], index: 4, kind: input, shape index: {}]
  %s5 = inlined_call_operand.hbm [shape: f32[3,1,128], index: 5, kind: output, shape index: {}]
  %s6 = sld [smem:[#allocation0]]
  $region53: #{tpu_custom_call.1} parent=0
    _
  %s8 = ssub.s32 1, %s6
  %s9 = scalar_select 0, %s8, %s6
  %10 = sst [smem:[#allocation2]] %s4
  $region1: #{tpu_custom_call.1} parent=0
    #allocation3 [shape = 'u8[1024]{0}', space=vmem, size = 0x400, scoped, tag = 'output window, operand 0']
    #allocation4 [shape = 's32[2]{0}', space=sflag, size = 0x8, scoped, tag = 'scoped memory for tpu_custom_call.1']
    %11 = vsyncpa [#allocation4], 0
    %s12 = scalar_lea.sflag [#allocation4], 1
    %13 = vsyncpa %s12, 0
    loop: start=0, step=1, limit=5
    $region2: #{tpu_custom_call.1} parent=1 // loop_pre_header
      _
    $region3: #{tpu_custom_call.1} parent=1 // loop_header
      %s15 = sphi 0, %s19
      %p16 = scmp.ge.s32.totalorder %s15, 5
      %s25 = sphi 0, %s27
      %s28 = sphi 0, %s25
      %s29 = sphi 0, %s28
      %s45 = sphi 0, %s29
      %s49 = sphi 0, %s49
      %s51 = sphi 0, %s49
      %s52 = sphi 0, %s51
      %s66 = sphi 0, %s52
      %s70 = sphi 0, %s70
      %s72 = sphi 0, %s70
      %s73 = sphi 0, %s72
      %s87 = sphi 0, %s73
      %s91 = sphi 0, %s91
      %s93 = sphi 0, %s91
      %s94 = sphi 0, %s93
      %s108 = sphi 0, %s94
      %s112 = sphi 0, %s112
      %s114 = sphi 0, %s112
      %s115 = sphi 0, %s114
      %s129 = sphi 0, %s115
      %s135 = sphi 0, %s137
      %s138 = sphi 0, %s135
      %s139 = sphi 0, %s138
      %s155 = sphi 0, %s139
    $region4: #{tpu_custom_call.1} parent=1 // loop_header_branch
      %18 = sbr.rel (%p16) target = $region8
    $region5: #{tpu_custom_call.1} parent=1 // loop_body
      %s20 = ssub.s32 %s15, 1
      %s21 = ssub.s32 %s15, 2
      %s22 = sadd.s32 %s15, 1
      %s23 = ssub.s32 %s15, %s22
      %p24 = scmp.eq.s32.totalorder %s23, 0
      %s26 = sadd.s32 %s25, 1
      %s27 = scalar_select %p24, %s25, %s26
      %p30 = pneg %p24
      %p31 = scmp.eq.s32.totalorder %s15, 2
      %p32 = por %p30, %p31
      %p33 = scmp.ne.s32.totalorder %s25, %s28
      %p34 = scmp.eq.s32.totalorder %s15, 0
      %p35 = por %p33, %p34
      %p36 = scmp.ne.s32.totalorder %s25, %s28
      %p37 = scmp.eq.s32.totalorder %s20, 2
      %p38 = por %p36, %p37
      %p39 = scmp.ne.s32.totalorder %s28, %s29
      %p40 = scmp.eq.s32.totalorder %s20, 0
      %p41 = por %p39, %p40
      %p42 = scmp.ne.s32.totalorder %s28, %s29
      %p43 = scmp.eq.s32.totalorder %s21, 2
      %p44 = por %p42, %p43
      %p46 = scmp.ne.s32.totalorder %s29, %s45
      %p47 = scmp.eq.s32.totalorder %s21, 0
      %p48 = por %p46, %p47
      %s50 = sadd.s32 %s49, 1
      %p53 = scmp.eq.s32.totalorder %s15, 2
      %p54 = scmp.ne.s32.totalorder %s49, %s51
      %p55 = scmp.eq.s32.totalorder %s15, 0
      %p56 = por %p54, %p55
      %p57 = scmp.ne.s32.totalorder %s49, %s51
      %p58 = scmp.eq.s32.totalorder %s20, 2
      %p59 = por %p57, %p58
      %p60 = scmp.ne.s32.totalorder %s51, %s52
      %p61 = scmp.eq.s32.totalorder %s20, 0
      %p62 = por %p60, %p61
      %p63 = scmp.ne.s32.totalorder %s51, %s52
      %p64 = scmp.eq.s32.totalorder %s21, 2
      %p65 = por %p63, %p64
      %p67 = scmp.ne.s32.totalorder %s52, %s66
      %p68 = scmp.eq.s32.totalorder %s21, 0
      %p69 = por %p67, %p68
      %s71 = sadd.s32 %s70, 1
      %p74 = scmp.eq.s32.totalorder %s15, 2
      %p75 = scmp.ne.s32.totalorder %s70, %s72
      %p76 = scmp.eq.s32.totalorder %s15, 0
      %p77 = por %p75, %p76
      %p78 = scmp.ne.s32.totalorder %s70, %s72
      %p79 = scmp.eq.s32.totalorder %s20, 2
      %p80 = por %p78, %p79
      %p81 = scmp.ne.s32.totalorder %s72, %s73
      %p82 = scmp.eq.s32.totalorder %s20, 0
      %p83 = por %p81, %p82
      %p84 = scmp.ne.s32.totalorder %s72, %s73
      %p85 = scmp.eq.s32.totalorder %s21, 2
      %p86 = por %p84, %p85
      %p88 = scmp.ne.s32.totalorder %s73, %s87
      %p89 = scmp.eq.s32.totalorder %s21, 0
      %p90 = por %p88, %p89
      %s92 = sadd.s32 %s91, 1
      %p95 = scmp.eq.s32.totalorder %s15, 2
      %p96 = scmp.ne.s32.totalorder %s91, %s93
      %p97 = scmp.eq.s32.totalorder %s15, 0
      %p98 = por %p96, %p97
      %p99 = scmp.ne.s32.totalorder %s91, %s93
      %p100 = scmp.eq.s32.totalorder %s20, 2
      %p101 = por %p99, %p100
      %p102 = scmp.ne.s32.totalorder %s93, %s94
      %p103 = scmp.eq.s32.totalorder %s20, 0
      %p104 = por %p102, %p103
      %p105 = scmp.ne.s32.totalorder %s93, %s94
      %p106 = scmp.eq.s32.totalorder %s21, 2
      %p107 = por %p105, %p106
      %p109 = scmp.ne.s32.totalorder %s94, %s108
      %p110 = scmp.eq.s32.totalorder %s21, 0
      %p111 = por %p109, %p110
      %s113 = sadd.s32 %s112, 1
      %p116 = scmp.eq.s32.totalorder %s15, 2
      %p117 = scmp.ne.s32.totalorder %s112, %s114
      %p118 = scmp.eq.s32.totalorder %s15, 0
      %p119 = por %p117, %p118
      %p120 = scmp.ne.s32.totalorder %s112, %s114
      %p121 = scmp.eq.s32.totalorder %s20, 2
      %p122 = por %p120, %p121
      %p123 = scmp.ne.s32.totalorder %s114, %s115
      %p124 = scmp.eq.s32.totalorder %s20, 0
      %p125 = por %p123, %p124
      %p126 = scmp.ne.s32.totalorder %s114, %s115
      %p127 = scmp.eq.s32.totalorder %s21, 2
      %p128 = por %p126, %p127
      %p130 = scmp.ne.s32.totalorder %s115, %s129
      %p131 = scmp.eq.s32.totalorder %s21, 0
      %p132 = por %p130, %p131
      %s133 = ssub.s32 %s15, %s22
      %p134 = scmp.eq.s32.totalorder %s133, 0
      %s136 = sadd.s32 %s135, 1
      %s137 = scalar_select %p134, %s135, %s136
      %p140 = pneg %p134
      %p141 = scmp.eq.s32.totalorder %s15, 2
      %p142 = por %p140, %p141
      %p143 = scmp.ne.s32.totalorder %s135, %s138
      %p144 = scmp.eq.s32.totalorder %s15, 0
      %p145 = por %p143, %p144
      %p146 = scmp.ne.s32.totalorder %s135, %s138
      %p147 = scmp.eq.s32.totalorder %s20, 2
      %p148 = por %p146, %p147
      %p149 = scmp.ne.s32.totalorder %s138, %s139
      %p150 = scmp.eq.s32.totalorder %s20, 0
      %p151 = por %p149, %p150
      %p152 = scmp.ne.s32.totalorder %s138, %s139
      %p153 = scmp.eq.s32.totalorder %s21, 2
      %p154 = por %p152, %p153
      %p156 = scmp.ne.s32.totalorder %s139, %s155
      %p157 = scmp.eq.s32.totalorder %s21, 0
      %p158 = por %p156, %p157
      %p159 = scmp.le.s32.totalorder 1, %s15
      %p160 = scmp.lt.s32.totalorder %s15, 4
      %p161 = pnand %p159, %p160
      %p162 = pneg %p161
      // Predicated region
      $region9: #{tpu_custom_call.1} parent=5 // pred_check
        _
      $region10: #{tpu_custom_call.1} parent=5 // pred_check_branch
        %164 = sbr.rel (%p161) target = $region12
      $region11: #{tpu_custom_call.1} parent=5 // pred_region
        %s165 = ssub.s32 %s15, 1
        // Predicated region
        $region13: #{tpu_custom_call.1} parent=11 // pred_check
          %p166 = pneg %p62
        $region14: #{tpu_custom_call.1} parent=11 // pred_check_branch
          %168 = sbr.rel (%p166) target = $region16
        $region15: #{tpu_custom_call.1} parent=11 // pred_region
          _
        $region16: #{tpu_custom_call.1} parent=11 // pred_fallthru
          _
        // Predicated region
        $region17: #{tpu_custom_call.1} parent=11 // pred_check
          %p169 = pneg %p83
        $region18: #{tpu_custom_call.1} parent=11 // pred_check_branch
          %171 = sbr.rel (%p169) target = $region20
        $region19: #{tpu_custom_call.1} parent=11 // pred_region
          _
        $region20: #{tpu_custom_call.1} parent=11 // pred_fallthru
          _
        // Predicated region
        $region21: #{tpu_custom_call.1} parent=11 // pred_check
          %p172 = pneg %p104
        $region22: #{tpu_custom_call.1} parent=11 // pred_check_branch
          %174 = sbr.rel (%p172) target = $region24
        $region23: #{tpu_custom_call.1} parent=11 // pred_region
          _
        $region24: #{tpu_custom_call.1} parent=11 // pred_fallthru
          _
        // Predicated region
        $region25: #{tpu_custom_call.1} parent=11 // pred_check
          %p175 = pneg %p125
        $region26: #{tpu_custom_call.1} parent=11 // pred_check_branch
          %177 = sbr.rel (%p175) target = $region28
        $region27: #{tpu_custom_call.1} parent=11 // pred_region
          _
        $region28: #{tpu_custom_call.1} parent=11 // pred_fallthru
          _
      $region12: #{tpu_custom_call.1} parent=5 // pred_fallthru
        _
      %p178 = scmp.lt.s32.totalorder %s15, 3
      // Predicated region
      $region29: #{tpu_custom_call.1} parent=5 // pred_check
        %p179 = pneg %p178
      $region30: #{tpu_custom_call.1} parent=5 // pred_check_branch
        %181 = sbr.rel (%p179) target = $region32
      $region31: #{tpu_custom_call.1} parent=5 // pred_region
        // Predicated region
        $region33: #{tpu_custom_call.1} parent=31 // pred_check
          %p182 = pneg %p35
        $region34: #{tpu_custom_call.1} parent=31 // pred_check_branch
          %184 = sbr.rel (%p182) target = $region36
        $region35: #{tpu_custom_call.1} parent=31 // pred_region
          %s185 = smul.u32 16, %s15
          %s186 = ssub.s32 38, %s185
          %p187 = scmp.lt.s32.totalorder %s186, 16
          %s188 = scalar_select %p187, %s186, 16
          %s189 = smul.u32 8, %s188
          %p190 = scmp.lt.s32.totalorder %s185, 37
          %s191 = scalar_select %p190, %s185, 37
          %s192 = smul.addr %s191, 8
          %s193 = scalar_lea.vmem %s0, %s192
          %s194 = smul.u32 16, %s15
          %s195 = ssub.s32 38, %s194
          %p196 = scmp.lt.s32.totalorder %s195, 16
          %s197 = scalar_select %p196, %s195, 16
          %s198 = smul.u32 8, %s197
        $region36: #{tpu_custom_call.1} parent=31 // pred_fallthru
          _
      $region32: #{tpu_custom_call.1} parent=5 // pred_fallthru
        _
      %p199 = scmp.le.s32.totalorder 1, %s15
      %p200 = scmp.lt.s32.totalorder %s15, 4
      %p201 = pnand %p199, %p200
      %p202 = pneg %p201
      // Predicated region
      $region37: #{tpu_custom_call.1} parent=5 // pred_check
        _
      $region38: #{tpu_custom_call.1} parent=5 // pred_check_branch
        %204 = sbr.rel (%p201) target = $region40
      $region39: #{tpu_custom_call.1} parent=5 // pred_region
        %s205 = ssub.s32 %s15, 1
        %s206 = smul.u32 16, %s20
        %s207 = ssub.s32 38, %s206
        %p208 = scmp.lt.s32.totalorder %s207, 16
        %s209 = scalar_select %p208, %s207, 16
        %s210 = smul.u32 8, %s209
        %p211 = scmp.lt.s32.totalorder %s206, 37
        %s212 = scalar_select %p211, %s206, 37
        %s213 = smul.addr %s212, 8
        %s214 = scalar_lea.vmem %s0, %s213
        %p215 = pneg %p41
        %p216 = pneg %p38
        %p217 = pneg %p62
        %p218 = pneg %p59
        %p219 = pneg %p83
        %p220 = pneg %p80
        %p221 = pneg %p104
        %p222 = pneg %p101
        %p223 = pneg %p125
        %p224 = pneg %p122
        %p225 = pneg %p151
        %p226 = pneg %p148
        %s227 = sand.u32 %s138, 1
        %s228 = scalar_lea.sflag [#allocation4], %s227
        %s229 = sand.u32 %s138, 1
        %s230 = scalar_lea.vmem [#allocation3], %s229
        %s231 = smul.u32 16, %s20
        %s232 = ssub.s32 38, %s231
        %p233 = scmp.lt.s32.totalorder %s232, 16
        %s234 = scalar_select %p233, %s232, 16
        %s235 = smul.u32 8, %s234
        %p236 = scmp.lt.s32.totalorder %s231, 37
        %s237 = scalar_select %p236, %s231, 37
        %s238 = smul.addr %s237, 8
        %s239 = scalar_lea.vmem %s0, %s238
        %s240 = smul.u32 16, %s20
        %s241 = ssub.s32 38, %s240
        %p242 = scmp.lt.s32.totalorder %s241, 16
        %s243 = scalar_select %p242, %s241, 16
        %s244 = smul.u32 8, %s243
        %v246 = vld [vmem:[%s239] sm:$0xff]
        %v247 = vld [vmem:[%s239 + $0x8] sm:$0xff]
        %v248 = vld [vmem:[%s239 + $0x10] sm:$0xff]
        %v249 = vld [vmem:[%s239 + $0x18] sm:$0xff]
        %v250 = vld [vmem:[%s239 + $0x20] sm:$0xff]
        %v251 = vld [vmem:[%s239 + $0x28] sm:$0xff]
        %v252 = vld [vmem:[%s239 + $0x30] sm:$0xff]
        %v253 = vld [vmem:[%s239 + $0x38] sm:$0xff]
        %v254 = vld [vmem:[%s239 + $0x40] sm:$0xff]
        %v255 = vld [vmem:[%s239 + $0x48] sm:$0xff]
        %v256 = vld [vmem:[%s239 + $0x50] sm:$0xff]
        %v257 = vld [vmem:[%s239 + $0x58] sm:$0xff]
        %v258 = vld [vmem:[%s239 + $0x60] sm:$0xff]
        %v259 = vld [vmem:[%s239 + $0x68] sm:$0xff]
        %v260 = vld [vmem:[%s239 + $0x70] sm:$0xff]
        %v261 = vld [vmem:[%s239 + $0x78] sm:$0xff]
        %v262 = vpack.c.bf16 %v247, %v246
        %v263 = vpack.c.bf16 %v249, %v248
        %v264 = vpack.c.bf16 %v251, %v250
        %v265 = vpack.c.bf16 %v253, %v252
        %v266 = vpack.c.bf16 %v255, %v254
        %v267 = vpack.c.bf16 %v257, %v256
        %v268 = vpack.c.bf16 %v259, %v258
        %v269 = vpack.c.bf16 %v261, %v260
        %v270 = vld [vmem:[%s1] sm:$0xff]
        %v271 = vld [vmem:[%s1 + $0x8] sm:$0xff]
        %v272 = vld [vmem:[%s1 + $0x10] sm:$0xff]
        %v273 = vld [vmem:[%s1 + $0x18] sm:$0xff]
        %v274 = vld [vmem:[%s1 + $0x20] sm:$0xff]
        %v275 = vld [vmem:[%s1 + $0x28] sm:$0xff]
        %v276 = vld [vmem:[%s1 + $0x30] sm:$0xff]
        %v277 = vld [vmem:[%s1 + $0x38] sm:$0xff]
        %v278 = vld [vmem:[%s1 + $0x40] sm:$0xff]
        %v279 = vld [vmem:[%s1 + $0x48] sm:$0xff]
        %v280 = vld [vmem:[%s1 + $0x50] sm:$0xff]
        %v281 = vld [vmem:[%s1 + $0x58] sm:$0xff]
        %v282 = vld [vmem:[%s1 + $0x60] sm:$0xff]
        %v283 = vld [vmem:[%s1 + $0x68] sm:$0xff]
        %v284 = vld [vmem:[%s1 + $0x70] sm:$0xff]
        %v285 = vld [vmem:[%s1 + $0x78] sm:$0xff]
        %v286 = vld [vmem:[%s2] sm:$0xf]
        %v288 = vperm.slane %v286, 0
        %v289 = vperm.slane %v286, 1
        %v290 = vperm.slane %v286, 2
        %v291 = vperm.slane %v286, 3
        %v312 = vunpack.c.l.b16 %v270
        %v313 = vunpack.c.h.b16 %v270
        %v314 = vunpack.c.l.b16 %v271
        %v315 = vunpack.c.h.b16 %v271
        %v316 = vunpack.c.l.b16 %v272
        %v317 = vunpack.c.h.b16 %v272
        %v318 = vunpack.c.l.b16 %v273
        %v319 = vunpack.c.h.b16 %v273
        %v320 = vunpack.c.l.b16 %v274
        %v321 = vunpack.c.h.b16 %v274
        %v322 = vunpack.c.l.b16 %v275
        %v323 = vunpack.c.h.b16 %v275
        %v324 = vunpack.c.l.b16 %v276
        %v325 = vunpack.c.h.b16 %v276
        %v326 = vunpack.c.l.b16 %v277
        %v327 = vunpack.c.h.b16 %v277
        %v328 = vunpack.c.l.b16 %v278
        %v329 = vunpack.c.h.b16 %v278
        %v330 = vunpack.c.l.b16 %v279
        %v331 = vunpack.c.h.b16 %v279
        %v332 = vunpack.c.l.b16 %v280
        %v333 = vunpack.c.h.b16 %v280
        %v334 = vunpack.c.l.b16 %v281
        %v335 = vunpack.c.h.b16 %v281
        %v336 = vunpack.c.l.b16 %v282
        %v337 = vunpack.c.h.b16 %v282
        %v338 = vunpack.c.l.b16 %v283
        %v339 = vunpack.c.h.b16 %v283
        %v340 = vunpack.c.l.b16 %v284
        %v341 = vunpack.c.h.b16 %v284
        %v342 = vunpack.c.l.b16 %v285
        %v343 = vunpack.c.h.b16 %v285
        %v344 = vpack.c.b16 %v316, %v312
        %v345 = vpack.c.b16 %v317, %v313
        %v346 = vpack.c.b16 %v318, %v314
        %v347 = vpack.c.b16 %v319, %v315
        %v348 = vpack.c.b16 %v324, %v320
        %v349 = vpack.c.b16 %v325, %v321
        %v350 = vpack.c.b16 %v326, %v322
        %v351 = vpack.c.b16 %v327, %v323
        %v352 = vpack.c.b16 %v332, %v328
        %v353 = vpack.c.b16 %v333, %v329
        %v354 = vpack.c.b16 %v334, %v330
        %v355 = vpack.c.b16 %v335, %v331
        %v356 = vpack.c.b16 %v340, %v336
        %v357 = vpack.c.b16 %v341, %v337
        %v358 = vpack.c.b16 %v342, %v338
        %v359 = vpack.c.b16 %v343, %v339
        %vm376 = vcmask 523264
        %v378 = vsel %vm376, %v262, 0
        %v381 = vsel %vm376, %v263, 0
        %v384 = vsel %vm376, %v264, 0
        %v387 = vsel %vm376, %v265, 0
        %v390 = vsel %vm376, %v266, 0
        %v393 = vsel %vm376, %v267, 0
        %v396 = vsel %vm376, %v268, 0
        %v399 = vsel %vm376, %v269, 0
        %401 = vmatpush.bf16.msra.mxu0 0
        %402 = vmatpush.bf16.msra.mxu0 0
        %403 = vmatpush.bf16.msra.mxu0 0
        %404 = vmatpush.bf16.msra.mxu0 0
        %405 = vmatpush.bf16.msra.mxu0 %v356
        %406 = vmatpush.bf16.msra.mxu0 %v352
        %407 = vmatpush.bf16.msra.mxu0 %v348
        %408 = vmatpush.bf16.msra.mxu0 %v344
        %409 = vmatmul.bf16.gmra.mxu0 %v378
        %v410 = vpop.f32.mrf.mxu0
        %v411 = vadd.f32 %v288, %v410
        %v412 = vpop.f32.mrf.mxu0
        %v413 = vadd.f32 %v288, %v412
        %414 = vmatmul.bf16.gmra.mxu0 %v381
        %v415 = vpop.f32.mrf.mxu0
        %v416 = vadd.f32 %v288, %v415
        %v417 = vpop.f32.mrf.mxu0
        %v418 = vadd.f32 %v288, %v417
        %419 = vmatmul.bf16.gmra.mxu0 %v384
        %v420 = vpop.f32.mrf.mxu0
        %v421 = vadd.f32 %v288, %v420
        %v422 = vpop.f32.mrf.mxu0
        %v423 = vadd.f32 %v288, %v422
        %424 = vmatmul.bf16.gmra.mxu0 %v387
        %v425 = vpop.f32.mrf.mxu0
        %v426 = vadd.f32 %v288, %v425
        %v427 = vpop.f32.mrf.mxu0
        %v428 = vadd.f32 %v288, %v427
        %429 = vmatmul.bf16.gmra.mxu0 %v390
        %v430 = vpop.f32.mrf.mxu0
        %v431 = vadd.f32 %v288, %v430
        %v432 = vpop.f32.mrf.mxu0
        %v433 = vadd.f32 %v288, %v432
        %434 = vmatmul.bf16.gmra.mxu0 %v393
        %v435 = vpop.f32.mrf.mxu0
        %v436 = vadd.f32 %v288, %v435
        %v437 = vpop.f32.mrf.mxu0
        %v438 = vadd.f32 %v288, %v437
        %439 = vmatmul.bf16.gmra.mxu0 %v396
        %v440 = vpop.f32.mrf.mxu0
        %v441 = vadd.f32 %v288, %v440
        %v442 = vpop.f32.mrf.mxu0
        %v443 = vadd.f32 %v288, %v442
        %444 = vmatmul.bf16.gmra.mxu0 %v399
        %v445 = vpop.f32.mrf.mxu0
        %v446 = vadd.f32 %v288, %v445
        %v447 = vpop.f32.mrf.mxu0
        %v448 = vadd.f32 %v288, %v447
        %449 = vdwg.mxu0
        %450 = vmatpush.bf16.msra.mxu0 0
        %451 = vmatpush.bf16.msra.mxu0 0
        %452 = vmatpush.bf16.msra.mxu0 0
        %453 = vmatpush.bf16.msra.mxu0 0
        %454 = vmatpush.bf16.msra.mxu0 %v357
        %455 = vmatpush.bf16.msra.mxu0 %v353
        %456 = vmatpush.bf16.msra.mxu0 %v349
        %457 = vmatpush.bf16.msra.mxu0 %v345
        %458 = vmatmul.bf16.gmra.mxu0 %v378
        %v459 = vpop.f32.mrf.mxu0
        %v460 = vadd.f32 %v289, %v459
        %v461 = vpop.f32.mrf.mxu0
        %v462 = vadd.f32 %v289, %v461
        %463 = vmatmul.bf16.gmra.mxu0 %v381
        %v464 = vpop.f32.mrf.mxu0
        %v465 = vadd.f32 %v289, %v464
        %v466 = vpop.f32.mrf.mxu0
        %v467 = vadd.f32 %v289, %v466
        %468 = vmatmul.bf16.gmra.mxu0 %v384
        %v469 = vpop.f32.mrf.mxu0
        %v470 = vadd.f32 %v289, %v469
        %v471 = vpop.f32.mrf.mxu0
        %v472 = vadd.f32 %v289, %v471
        %473 = vmatmul.bf16.gmra.mxu0 %v387
        %v474 = vpop.f32.mrf.mxu0
        %v475 = vadd.f32 %v289, %v474
        %v476 = vpop.f32.mrf.mxu0
        %v477 = vadd.f32 %v289, %v476
        %478 = vmatmul.bf16.gmra.mxu0 %v390
        %v479 = vpop.f32.mrf.mxu0
        %v480 = vadd.f32 %v289, %v479
        %v481 = vpop.f32.mrf.mxu0
        %v482 = vadd.f32 %v289, %v481
        %483 = vmatmul.bf16.gmra.mxu0 %v393
        %v484 = vpop.f32.mrf.mxu0
        %v485 = vadd.f32 %v289, %v484
        %v486 = vpop.f32.mrf.mxu0
        %v487 = vadd.f32 %v289, %v486
        %488 = vmatmul.bf16.gmra.mxu0 %v396
        %v489 = vpop.f32.mrf.mxu0
        %v490 = vadd.f32 %v289, %v489
        %v491 = vpop.f32.mrf.mxu0
        %v492 = vadd.f32 %v289, %v491
        %493 = vmatmul.bf16.gmra.mxu0 %v399
        %v494 = vpop.f32.mrf.mxu0
        %v495 = vadd.f32 %v289, %v494
        %v496 = vpop.f32.mrf.mxu0
        %v497 = vadd.f32 %v289, %v496
        %498 = vdwg.mxu0
        %499 = vmatpush.bf16.msra.mxu0 0
        %500 = vmatpush.bf16.msra.mxu0 0
        %501 = vmatpush.bf16.msra.mxu0 0
        %502 = vmatpush.bf16.msra.mxu0 0
        %503 = vmatpush.bf16.msra.mxu0 %v358
        %504 = vmatpush.bf16.msra.mxu0 %v354
        %505 = vmatpush.bf16.msra.mxu0 %v350
        %506 = vmatpush.bf16.msra.mxu0 %v346
        %507 = vmatmul.bf16.gmra.mxu0 %v378
        %v508 = vpop.f32.mrf.mxu0
        %v509 = vadd.f32 %v290, %v508
        %v510 = vpop.f32.mrf.mxu0
        %v511 = vadd.f32 %v290, %v510
        %512 = vmatmul.bf16.gmra.mxu0 %v381
        %v513 = vpop.f32.mrf.mxu0
        %v514 = vadd.f32 %v290, %v513
        %v515 = vpop.f32.mrf.mxu0
        %v516 = vadd.f32 %v290, %v515
        %517 = vmatmul.bf16.gmra.mxu0 %v384
        %v518 = vpop.f32.mrf.mxu0
        %v519 = vadd.f32 %v290, %v518
        %v520 = vpop.f32.mrf.mxu0
        %v521 = vadd.f32 %v290, %v520
        %522 = vmatmul.bf16.gmra.mxu0 %v387
        %v523 = vpop.f32.mrf.mxu0
        %v524 = vadd.f32 %v290, %v523
        %v525 = vpop.f32.mrf.mxu0
        %v526 = vadd.f32 %v290, %v525
        %527 = vmatmul.bf16.gmra.mxu0 %v390
        %v528 = vpop.f32.mrf.mxu0
        %v529 = vadd.f32 %v290, %v528
        %v530 = vpop.f32.mrf.mxu0
        %v531 = vadd.f32 %v290, %v530
        %532 = vmatmul.bf16.gmra.mxu0 %v393
        %v533 = vpop.f32.mrf.mxu0
        %v534 = vadd.f32 %v290, %v533
        %v535 = vpop.f32.mrf.mxu0
        %v536 = vadd.f32 %v290, %v535
        %537 = vmatmul.bf16.gmra.mxu0 %v396
        %v538 = vpop.f32.mrf.mxu0
        %v539 = vadd.f32 %v290, %v538
        %v540 = vpop.f32.mrf.mxu0
        %v541 = vadd.f32 %v290, %v540
        %542 = vmatmul.bf16.gmra.mxu0 %v399
        %v543 = vpop.f32.mrf.mxu0
        %v544 = vadd.f32 %v290, %v543
        %v545 = vpop.f32.mrf.mxu0
        %v546 = vadd.f32 %v290, %v545
        %547 = vdwg.mxu0
        %548 = vmatpush.bf16.msra.mxu0 0
        %549 = vmatpush.bf16.msra.mxu0 0
        %550 = vmatpush.bf16.msra.mxu0 0
        %551 = vmatpush.bf16.msra.mxu0 0
        %552 = vmatpush.bf16.msra.mxu0 %v359
        %553 = vmatpush.bf16.msra.mxu0 %v355
        %554 = vmatpush.bf16.msra.mxu0 %v351
        %555 = vmatpush.bf16.msra.mxu0 %v347
        %556 = vmatmul.bf16.gmra.mxu0 %v378
        %v557 = vpop.f32.mrf.mxu0
        %v558 = vadd.f32 %v291, %v557
        %v559 = vpop.f32.mrf.mxu0
        %v560 = vadd.f32 %v291, %v559
        %561 = vmatmul.bf16.gmra.mxu0 %v381
        %v562 = vpop.f32.mrf.mxu0
        %v563 = vadd.f32 %v291, %v562
        %v564 = vpop.f32.mrf.mxu0
        %v565 = vadd.f32 %v291, %v564
        %566 = vmatmul.bf16.gmra.mxu0 %v384
        %v567 = vpop.f32.mrf.mxu0
        %v568 = vadd.f32 %v291, %v567
        %v569 = vpop.f32.mrf.mxu0
        %v570 = vadd.f32 %v291, %v569
        %571 = vmatmul.bf16.gmra.mxu0 %v387
        %v572 = vpop.f32.mrf.mxu0
        %v573 = vadd.f32 %v291, %v572
        %v574 = vpop.f32.mrf.mxu0
        %v575 = vadd.f32 %v291, %v574
        %576 = vmatmul.bf16.gmra.mxu0 %v390
        %v577 = vpop.f32.mrf.mxu0
        %v578 = vadd.f32 %v291, %v577
        %v579 = vpop.f32.mrf.mxu0
        %v580 = vadd.f32 %v291, %v579
        %581 = vmatmul.bf16.gmra.mxu0 %v393
        %v582 = vpop.f32.mrf.mxu0
        %v583 = vadd.f32 %v291, %v582
        %v584 = vpop.f32.mrf.mxu0
        %v585 = vadd.f32 %v291, %v584
        %586 = vmatmul.bf16.gmra.mxu0 %v396
        %v587 = vpop.f32.mrf.mxu0
        %v588 = vadd.f32 %v291, %v587
        %v589 = vpop.f32.mrf.mxu0
        %v590 = vadd.f32 %v291, %v589
        %591 = vmatmul.bf16.gmra.mxu0 %v399
        %v592 = vpop.f32.mrf.mxu0
        %v593 = vadd.f32 %v291, %v592
        %v594 = vpop.f32.mrf.mxu0
        %v595 = vadd.f32 %v291, %v594
        %596 = vdwg.mxu0
        %v597 = vmax.f32 %v411, 0.0
        %v598 = vmax.f32 %v460, 0.0
        %v599 = vmax.f32 %v509, 0.0
        %v600 = vmax.f32 %v558, 0.0
        %v601 = vmax.f32 %v413, 0.0
        %v602 = vmax.f32 %v462, 0.0
        %v603 = vmax.f32 %v511, 0.0
        %v604 = vmax.f32 %v560, 0.0
        %v605 = vmax.f32 %v416, 0.0
        %v606 = vmax.f32 %v465, 0.0
        %v607 = vmax.f32 %v514, 0.0
        %v608 = vmax.f32 %v563, 0.0
        %v609 = vmax.f32 %v418, 0.0
        %v610 = vmax.f32 %v467, 0.0
        %v611 = vmax.f32 %v516, 0.0
        %v612 = vmax.f32 %v565, 0.0
        %v613 = vmax.f32 %v421, 0.0
        %v614 = vmax.f32 %v470, 0.0
        %v615 = vmax.f32 %v519, 0.0
        %v616 = vmax.f32 %v568, 0.0
        %v617 = vmax.f32 %v423, 0.0
        %v618 = vmax.f32 %v472, 0.0
        %v619 = vmax.f32 %v521, 0.0
        %v620 = vmax.f32 %v570, 0.0
        %v621 = vmax.f32 %v426, 0.0
        %v622 = vmax.f32 %v475, 0.0
        %v623 = vmax.f32 %v524, 0.0
        %v624 = vmax.f32 %v573, 0.0
        %v625 = vmax.f32 %v428, 0.0
        %v626 = vmax.f32 %v477, 0.0
        %v627 = vmax.f32 %v526, 0.0
        %v628 = vmax.f32 %v575, 0.0
        %v629 = vmax.f32 %v431, 0.0
        %v630 = vmax.f32 %v480, 0.0
        %v631 = vmax.f32 %v529, 0.0
        %v632 = vmax.f32 %v578, 0.0
        %v633 = vmax.f32 %v433, 0.0
        %v634 = vmax.f32 %v482, 0.0
        %v635 = vmax.f32 %v531, 0.0
        %v636 = vmax.f32 %v580, 0.0
        %v637 = vmax.f32 %v436, 0.0
        %v638 = vmax.f32 %v485, 0.0
        %v639 = vmax.f32 %v534, 0.0
        %v640 = vmax.f32 %v583, 0.0
        %v641 = vmax.f32 %v438, 0.0
        %v642 = vmax.f32 %v487, 0.0
        %v643 = vmax.f32 %v536, 0.0
        %v644 = vmax.f32 %v585, 0.0
        %v645 = vmax.f32 %v441, 0.0
        %v646 = vmax.f32 %v490, 0.0
        %v647 = vmax.f32 %v539, 0.0
        %v648 = vmax.f32 %v588, 0.0
        %v649 = vmax.f32 %v443, 0.0
        %v650 = vmax.f32 %v492, 0.0
        %v651 = vmax.f32 %v541, 0.0
        %v652 = vmax.f32 %v590, 0.0
        %v653 = vmax.f32 %v446, 0.0
        %v654 = vmax.f32 %v495, 0.0
        %v655 = vmax.f32 %v544, 0.0
        %v656 = vmax.f32 %v593, 0.0
        %v657 = vmax.f32 %v448, 0.0
        %v658 = vmax.f32 %v497, 0.0
        %v659 = vmax.f32 %v546, 0.0
        %v660 = vmax.f32 %v595, 0.0
        %v661 = vld [vmem:[%s3] sm:$0xf]
        %v663 = vperm.slane %v661, 0
        %v664 = vperm.slane %v661, 1
        %v665 = vperm.slane %v661, 2
        %v666 = vperm.slane %v661, 3
        %v671 = vmul.f32 %v597, %v663
        %v672 = vmul.f32 %v598, %v664
        %v673 = vmul.f32 %v599, %v665
        %v674 = vmul.f32 %v600, %v666
        %v675 = vmul.f32 %v601, %v663
        %v676 = vmul.f32 %v602, %v664
        %v677 = vmul.f32 %v603, %v665
        %v678 = vmul.f32 %v604, %v666
        %v679 = vmul.f32 %v605, %v663
        %v680 = vmul.f32 %v606, %v664
        %v681 = vmul.f32 %v607, %v665
        %v682 = vmul.f32 %v608, %v666
        %v683 = vmul.f32 %v609, %v663
        %v684 = vmul.f32 %v610, %v664
        %v685 = vmul.f32 %v611, %v665
        %v686 = vmul.f32 %v612, %v666
        %v687 = vmul.f32 %v613, %v663
        %v688 = vmul.f32 %v614, %v664
        %v689 = vmul.f32 %v615, %v665
        %v690 = vmul.f32 %v616, %v666
        %v691 = vmul.f32 %v617, %v663
        %v692 = vmul.f32 %v618, %v664
        %v693 = vmul.f32 %v619, %v665
        %v694 = vmul.f32 %v620, %v666
        %v695 = vmul.f32 %v621, %v663
        %v696 = vmul.f32 %v622, %v664
        %v697 = vmul.f32 %v623, %v665
        %v698 = vmul.f32 %v624, %v666
        %v699 = vmul.f32 %v625, %v663
        %v700 = vmul.f32 %v626, %v664
        %v701 = vmul.f32 %v627, %v665
        %v702 = vmul.f32 %v628, %v666
        %v703 = vmul.f32 %v629, %v663
        %v704 = vmul.f32 %v630, %v664
        %v705 = vmul.f32 %v631, %v665
        %v706 = vmul.f32 %v632, %v666
        %v707 = vmul.f32 %v633, %v663
        %v708 = vmul.f32 %v634, %v664
        %v709 = vmul.f32 %v635, %v665
        %v710 = vmul.f32 %v636, %v666
        %v711 = vmul.f32 %v637, %v663
        %v712 = vmul.f32 %v638, %v664
        %v713 = vmul.f32 %v639, %v665
        %v714 = vmul.f32 %v640, %v666
        %v715 = vmul.f32 %v641, %v663
        %v716 = vmul.f32 %v642, %v664
        %v717 = vmul.f32 %v643, %v665
        %v718 = vmul.f32 %v644, %v666
        %v719 = vmul.f32 %v645, %v663
        %v720 = vmul.f32 %v646, %v664
        %v721 = vmul.f32 %v647, %v665
        %v722 = vmul.f32 %v648, %v666
        %v723 = vmul.f32 %v649, %v663
        %v724 = vmul.f32 %v650, %v664
        %v725 = vmul.f32 %v651, %v665
        %v726 = vmul.f32 %v652, %v666
        %v727 = vmul.f32 %v653, %v663
        %v728 = vmul.f32 %v654, %v664
        %v729 = vmul.f32 %v655, %v665
        %v730 = vmul.f32 %v656, %v666
        %v731 = vmul.f32 %v657, %v663
        %v732 = vmul.f32 %v658, %v664
        %v733 = vmul.f32 %v659, %v665
        %v734 = vmul.f32 %v660, %v666
        %v735 = vadd.f32 %v671, %v672
        %v736 = vadd.f32 %v735, %v673
        %v737 = vadd.f32 %v736, %v674
        %738 = vadd.xlane.f32.xlu0 %v737
        %v739 = vpop.xlane.xlu0 %738
        %v740 = vadd.f32 %v675, %v676
        %v741 = vadd.f32 %v740, %v677
        %v742 = vadd.f32 %v741, %v678
        %743 = vadd.xlane.f32.xlu0 %v742
        %v744 = vpop.xlane.xlu0 %743
        %v745 = vadd.f32 %v679, %v680
        %v746 = vadd.f32 %v745, %v681
        %v747 = vadd.f32 %v746, %v682
        %748 = vadd.xlane.f32.xlu0 %v747
        %v749 = vpop.xlane.xlu0 %748
        %v750 = vadd.f32 %v683, %v684
        %v751 = vadd.f32 %v750, %v685
        %v752 = vadd.f32 %v751, %v686
        %753 = vadd.xlane.f32.xlu0 %v752
        %v754 = vpop.xlane.xlu0 %753
        %v755 = vadd.f32 %v687, %v688
        %v756 = vadd.f32 %v755, %v689
        %v757 = vadd.f32 %v756, %v690
        %758 = vadd.xlane.f32.xlu0 %v757
        %v759 = vpop.xlane.xlu0 %758
        %v760 = vadd.f32 %v691, %v692
        %v761 = vadd.f32 %v760, %v693
        %v762 = vadd.f32 %v761, %v694
        %763 = vadd.xlane.f32.xlu0 %v762
        %v764 = vpop.xlane.xlu0 %763
        %v765 = vadd.f32 %v695, %v696
        %v766 = vadd.f32 %v765, %v697
        %v767 = vadd.f32 %v766, %v698
        %768 = vadd.xlane.f32.xlu0 %v767
        %v769 = vpop.xlane.xlu0 %768
        %v770 = vadd.f32 %v699, %v700
        %v771 = vadd.f32 %v770, %v701
        %v772 = vadd.f32 %v771, %v702
        %773 = vadd.xlane.f32.xlu0 %v772
        %v774 = vpop.xlane.xlu0 %773
        %v775 = vadd.f32 %v703, %v704
        %v776 = vadd.f32 %v775, %v705
        %v777 = vadd.f32 %v776, %v706
        %778 = vadd.xlane.f32.xlu0 %v777
        %v779 = vpop.xlane.xlu0 %778
        %v780 = vadd.f32 %v707, %v708
        %v781 = vadd.f32 %v780, %v709
        %v782 = vadd.f32 %v781, %v710
        %783 = vadd.xlane.f32.xlu0 %v782
        %v784 = vpop.xlane.xlu0 %783
        %v785 = vadd.f32 %v711, %v712
        %v786 = vadd.f32 %v785, %v713
        %v787 = vadd.f32 %v786, %v714
        %788 = vadd.xlane.f32.xlu0 %v787
        %v789 = vpop.xlane.xlu0 %788
        %v790 = vadd.f32 %v715, %v716
        %v791 = vadd.f32 %v790, %v717
        %v792 = vadd.f32 %v791, %v718
        %793 = vadd.xlane.f32.xlu0 %v792
        %v794 = vpop.xlane.xlu0 %793
        %v795 = vadd.f32 %v719, %v720
        %v796 = vadd.f32 %v795, %v721
        %v797 = vadd.f32 %v796, %v722
        %798 = vadd.xlane.f32.xlu0 %v797
        %v799 = vpop.xlane.xlu0 %798
        %v800 = vadd.f32 %v723, %v724
        %v801 = vadd.f32 %v800, %v725
        %v802 = vadd.f32 %v801, %v726
        %803 = vadd.xlane.f32.xlu0 %v802
        %v804 = vpop.xlane.xlu0 %803
        %v805 = vadd.f32 %v727, %v728
        %v806 = vadd.f32 %v805, %v729
        %v807 = vadd.f32 %v806, %v730
        %808 = vadd.xlane.f32.xlu0 %v807
        %v809 = vpop.xlane.xlu0 %808
        %v810 = vadd.f32 %v731, %v732
        %v811 = vadd.f32 %v810, %v733
        %v812 = vadd.f32 %v811, %v734
        %813 = vadd.xlane.f32.xlu0 %v812
        %v814 = vpop.xlane.xlu0 %813
        %s815 = sld [smem:[#allocation2]]
        %v816 = vstv %s815
        %v817 = vadd.f32 %v739, %v816
        %v818 = vadd.f32 %v744, %v816
        %v819 = vadd.f32 %v749, %v816
        %v820 = vadd.f32 %v754, %v816
        %v821 = vadd.f32 %v759, %v816
        %v822 = vadd.f32 %v764, %v816
        %v823 = vadd.f32 %v769, %v816
        %v824 = vadd.f32 %v774, %v816
        %v825 = vadd.f32 %v779, %v816
        %v826 = vadd.f32 %v784, %v816
        %v827 = vadd.f32 %v789, %v816
        %v828 = vadd.f32 %v794, %v816
        %v829 = vadd.f32 %v799, %v816
        %v830 = vadd.f32 %v804, %v816
        %v831 = vadd.f32 %v809, %v816
        %v832 = vadd.f32 %v814, %v816
        %v833 = vxor.u32 %v817, 2147483648
        %v834 = vxor.u32 %v818, 2147483648
        %v835 = vxor.u32 %v819, 2147483648
        %v836 = vxor.u32 %v820, 2147483648
        %v837 = vxor.u32 %v821, 2147483648
        %v838 = vxor.u32 %v822, 2147483648
        %v839 = vxor.u32 %v823, 2147483648
        %v840 = vxor.u32 %v824, 2147483648
        %v841 = vxor.u32 %v825, 2147483648
        %v842 = vxor.u32 %v826, 2147483648
        %v843 = vxor.u32 %v827, 2147483648
        %v844 = vxor.u32 %v828, 2147483648
        %v845 = vxor.u32 %v829, 2147483648
        %v846 = vxor.u32 %v830, 2147483648
        %v847 = vxor.u32 %v831, 2147483648
        %v848 = vxor.u32 %v832, 2147483648
        %v849 = vmul.f32 %v833, 1.442695
        %v850 = vpow.pop %v849
        %v851 = vmul.f32 %v834, 1.442695
        %v852 = vpow.pop %v851
        %v853 = vmul.f32 %v835, 1.442695
        %v854 = vpow.pop %v853
        %v855 = vmul.f32 %v836, 1.442695
        %v856 = vpow.pop %v855
        %v857 = vmul.f32 %v837, 1.442695
        %v858 = vpow.pop %v857
        %v859 = vmul.f32 %v838, 1.442695
        %v860 = vpow.pop %v859
        %v861 = vmul.f32 %v839, 1.442695
        %v862 = vpow.pop %v861
        %v863 = vmul.f32 %v840, 1.442695
        %v864 = vpow.pop %v863
        %v865 = vmul.f32 %v841, 1.442695
        %v866 = vpow.pop %v865
        %v867 = vmul.f32 %v842, 1.442695
        %v868 = vpow.pop %v867
        %v869 = vmul.f32 %v843, 1.442695
        %v870 = vpow.pop %v869
        %v871 = vmul.f32 %v844, 1.442695
        %v872 = vpow.pop %v871
        %v873 = vmul.f32 %v845, 1.442695
        %v874 = vpow.pop %v873
        %v875 = vmul.f32 %v846, 1.442695
        %v876 = vpow.pop %v875
        %v877 = vmul.f32 %v847, 1.442695
        %v878 = vpow.pop %v877
        %v879 = vmul.f32 %v848, 1.442695
        %v880 = vpow.pop %v879
        %v881 = vadd.f32 %v850, 1.0
        %v882 = vadd.f32 %v852, 1.0
        %v883 = vadd.f32 %v854, 1.0
        %v884 = vadd.f32 %v856, 1.0
        %v885 = vadd.f32 %v858, 1.0
        %v886 = vadd.f32 %v860, 1.0
        %v887 = vadd.f32 %v862, 1.0
        %v888 = vadd.f32 %v864, 1.0
        %v889 = vadd.f32 %v866, 1.0
        %v890 = vadd.f32 %v868, 1.0
        %v891 = vadd.f32 %v870, 1.0
        %v892 = vadd.f32 %v872, 1.0
        %v893 = vadd.f32 %v874, 1.0
        %v894 = vadd.f32 %v876, 1.0
        %v895 = vadd.f32 %v878, 1.0
        %v896 = vadd.f32 %v880, 1.0
        %v897 = vrcp.pop %v881
        %v898 = vmul.f32 %v881, %v897
        %v899 = vsub.f32 1.0, %v898
        %v900 = vmul.f32 %v897, %v899
        %v901 = vadd.f32 %v897, %v900
        %vm902 = vweird.f32 %v881
        %vm903 = vweird.f32 %v897
        %vm904 = vmor %vm902, %vm903
        %v905 = vsel %vm904, %v897, %v901
        %v906 = vand.u32 2147483647, %v881
        %vm907 = vcmp.eq.f32.partialorder %v906, 8.507059e+37
        %v908 = vand.u32 %v881, 2147483648
        %v909 = vor.u32 1.1754944e-38, %v908
        %v910 = vsel %vm907, %v909, %v905
        %v911 = vmul.f32 1.0, %v910
        %v912 = vrcp.pop %v882
        %v913 = vmul.f32 %v882, %v912
        %v914 = vsub.f32 1.0, %v913
        %v915 = vmul.f32 %v912, %v914
        %v916 = vadd.f32 %v912, %v915
        %vm917 = vweird.f32 %v882
        %vm918 = vweird.f32 %v912
        %vm919 = vmor %vm917, %vm918
        %v920 = vsel %vm919, %v912, %v916
        %v921 = vand.u32 2147483647, %v882
        %vm922 = vcmp.eq.f32.partialorder %v921, 8.507059e+37
        %v923 = vand.u32 %v882, 2147483648
        %v924 = vor.u32 1.1754944e-38, %v923
        %v925 = vsel %vm922, %v924, %v920
        %v926 = vmul.f32 1.0, %v925
        %v927 = vrcp.pop %v883
        %v928 = vmul.f32 %v883, %v927
        %v929 = vsub.f32 1.0, %v928
        %v930 = vmul.f32 %v927, %v929
        %v931 = vadd.f32 %v927, %v930
        %vm932 = vweird.f32 %v883
        %vm933 = vweird.f32 %v927
        %vm934 = vmor %vm932, %vm933
        %v935 = vsel %vm934, %v927, %v931
        %v936 = vand.u32 2147483647, %v883
        %vm937 = vcmp.eq.f32.partialorder %v936, 8.507059e+37
        %v938 = vand.u32 %v883, 2147483648
        %v939 = vor.u32 1.1754944e-38, %v938
        %v940 = vsel %vm937, %v939, %v935
        %v941 = vmul.f32 1.0, %v940
        %v942 = vrcp.pop %v884
        %v943 = vmul.f32 %v884, %v942
        %v944 = vsub.f32 1.0, %v943
        %v945 = vmul.f32 %v942, %v944
        %v946 = vadd.f32 %v942, %v945
        %vm947 = vweird.f32 %v884
        %vm948 = vweird.f32 %v942
        %vm949 = vmor %vm947, %vm948
        %v950 = vsel %vm949, %v942, %v946
        %v951 = vand.u32 2147483647, %v884
        %vm952 = vcmp.eq.f32.partialorder %v951, 8.507059e+37
        %v953 = vand.u32 %v884, 2147483648
        %v954 = vor.u32 1.1754944e-38, %v953
        %v955 = vsel %vm952, %v954, %v950
        %v956 = vmul.f32 1.0, %v955
        %v957 = vrcp.pop %v885
        %v958 = vmul.f32 %v885, %v957
        %v959 = vsub.f32 1.0, %v958
        %v960 = vmul.f32 %v957, %v959
        %v961 = vadd.f32 %v957, %v960
        %vm962 = vweird.f32 %v885
        %vm963 = vweird.f32 %v957
        %vm964 = vmor %vm962, %vm963
        %v965 = vsel %vm964, %v957, %v961
        %v966 = vand.u32 2147483647, %v885
        %vm967 = vcmp.eq.f32.partialorder %v966, 8.507059e+37
        %v968 = vand.u32 %v885, 2147483648
        %v969 = vor.u32 1.1754944e-38, %v968
        %v970 = vsel %vm967, %v969, %v965
        %v971 = vmul.f32 1.0, %v970
        %v972 = vrcp.pop %v886
        %v973 = vmul.f32 %v886, %v972
        %v974 = vsub.f32 1.0, %v973
        %v975 = vmul.f32 %v972, %v974
        %v976 = vadd.f32 %v972, %v975
        %vm977 = vweird.f32 %v886
        %vm978 = vweird.f32 %v972
        %vm979 = vmor %vm977, %vm978
        %v980 = vsel %vm979, %v972, %v976
        %v981 = vand.u32 2147483647, %v886
        %vm982 = vcmp.eq.f32.partialorder %v981, 8.507059e+37
        %v983 = vand.u32 %v886, 2147483648
        %v984 = vor.u32 1.1754944e-38, %v983
        %v985 = vsel %vm982, %v984, %v980
        %v986 = vmul.f32 1.0, %v985
        %v987 = vrcp.pop %v887
        %v988 = vmul.f32 %v887, %v987
        %v989 = vsub.f32 1.0, %v988
        %v990 = vmul.f32 %v987, %v989
        %v991 = vadd.f32 %v987, %v990
        %vm992 = vweird.f32 %v887
        %vm993 = vweird.f32 %v987
        %vm994 = vmor %vm992, %vm993
        %v995 = vsel %vm994, %v987, %v991
        %v996 = vand.u32 2147483647, %v887
        %vm997 = vcmp.eq.f32.partialorder %v996, 8.507059e+37
        %v998 = vand.u32 %v887, 2147483648
        %v999 = vor.u32 1.1754944e-38, %v998
        %v1000 = vsel %vm997, %v999, %v995
        %v1001 = vmul.f32 1.0, %v1000
        %v1002 = vrcp.pop %v888
        %v1003 = vmul.f32 %v888, %v1002
        %v1004 = vsub.f32 1.0, %v1003
        %v1005 = vmul.f32 %v1002, %v1004
        %v1006 = vadd.f32 %v1002, %v1005
        %vm1007 = vweird.f32 %v888
        %vm1008 = vweird.f32 %v1002
        %vm1009 = vmor %vm1007, %vm1008
        %v1010 = vsel %vm1009, %v1002, %v1006
        %v1011 = vand.u32 2147483647, %v888
        %vm1012 = vcmp.eq.f32.partialorder %v1011, 8.507059e+37
        %v1013 = vand.u32 %v888, 2147483648
        %v1014 = vor.u32 1.1754944e-38, %v1013
        %v1015 = vsel %vm1012, %v1014, %v1010
        %v1016 = vmul.f32 1.0, %v1015
        %v1017 = vrcp.pop %v889
        %v1018 = vmul.f32 %v889, %v1017
        %v1019 = vsub.f32 1.0, %v1018
        %v1020 = vmul.f32 %v1017, %v1019
        %v1021 = vadd.f32 %v1017, %v1020
        %vm1022 = vweird.f32 %v889
        %vm1023 = vweird.f32 %v1017
        %vm1024 = vmor %vm1022, %vm1023
        %v1025 = vsel %vm1024, %v1017, %v1021
        %v1026 = vand.u32 2147483647, %v889
        %vm1027 = vcmp.eq.f32.partialorder %v1026, 8.507059e+37
        %v1028 = vand.u32 %v889, 2147483648
        %v1029 = vor.u32 1.1754944e-38, %v1028
        %v1030 = vsel %vm1027, %v1029, %v1025
        %v1031 = vmul.f32 1.0, %v1030
        %v1032 = vrcp.pop %v890
        %v1033 = vmul.f32 %v890, %v1032
        %v1034 = vsub.f32 1.0, %v1033
        %v1035 = vmul.f32 %v1032, %v1034
        %v1036 = vadd.f32 %v1032, %v1035
        %vm1037 = vweird.f32 %v890
        %vm1038 = vweird.f32 %v1032
        %vm1039 = vmor %vm1037, %vm1038
        %v1040 = vsel %vm1039, %v1032, %v1036
        %v1041 = vand.u32 2147483647, %v890
        %vm1042 = vcmp.eq.f32.partialorder %v1041, 8.507059e+37
        %v1043 = vand.u32 %v890, 2147483648
        %v1044 = vor.u32 1.1754944e-38, %v1043
        %v1045 = vsel %vm1042, %v1044, %v1040
        %v1046 = vmul.f32 1.0, %v1045
        %v1047 = vrcp.pop %v891
        %v1048 = vmul.f32 %v891, %v1047
        %v1049 = vsub.f32 1.0, %v1048
        %v1050 = vmul.f32 %v1047, %v1049
        %v1051 = vadd.f32 %v1047, %v1050
        %vm1052 = vweird.f32 %v891
        %vm1053 = vweird.f32 %v1047
        %vm1054 = vmor %vm1052, %vm1053
        %v1055 = vsel %vm1054, %v1047, %v1051
        %v1056 = vand.u32 2147483647, %v891
        %vm1057 = vcmp.eq.f32.partialorder %v1056, 8.507059e+37
        %v1058 = vand.u32 %v891, 2147483648
        %v1059 = vor.u32 1.1754944e-38, %v1058
        %v1060 = vsel %vm1057, %v1059, %v1055
        %v1061 = vmul.f32 1.0, %v1060
        %v1062 = vrcp.pop %v892
        %v1063 = vmul.f32 %v892, %v1062
        %v1064 = vsub.f32 1.0, %v1063
        %v1065 = vmul.f32 %v1062, %v1064
        %v1066 = vadd.f32 %v1062, %v1065
        %vm1067 = vweird.f32 %v892
        %vm1068 = vweird.f32 %v1062
        %vm1069 = vmor %vm1067, %vm1068
        %v1070 = vsel %vm1069, %v1062, %v1066
        %v1071 = vand.u32 2147483647, %v892
        %vm1072 = vcmp.eq.f32.partialorder %v1071, 8.507059e+37
        %v1073 = vand.u32 %v892, 2147483648
        %v1074 = vor.u32 1.1754944e-38, %v1073
        %v1075 = vsel %vm1072, %v1074, %v1070
        %v1076 = vmul.f32 1.0, %v1075
        %v1077 = vrcp.pop %v893
        %v1078 = vmul.f32 %v893, %v1077
        %v1079 = vsub.f32 1.0, %v1078
        %v1080 = vmul.f32 %v1077, %v1079
        %v1081 = vadd.f32 %v1077, %v1080
        %vm1082 = vweird.f32 %v893
        %vm1083 = vweird.f32 %v1077
        %vm1084 = vmor %vm1082, %vm1083
        %v1085 = vsel %vm1084, %v1077, %v1081
        %v1086 = vand.u32 2147483647, %v893
        %vm1087 = vcmp.eq.f32.partialorder %v1086, 8.507059e+37
        %v1088 = vand.u32 %v893, 2147483648
        %v1089 = vor.u32 1.1754944e-38, %v1088
        %v1090 = vsel %vm1087, %v1089, %v1085
        %v1091 = vmul.f32 1.0, %v1090
        %v1092 = vrcp.pop %v894
        %v1093 = vmul.f32 %v894, %v1092
        %v1094 = vsub.f32 1.0, %v1093
        %v1095 = vmul.f32 %v1092, %v1094
        %v1096 = vadd.f32 %v1092, %v1095
        %vm1097 = vweird.f32 %v894
        %vm1098 = vweird.f32 %v1092
        %vm1099 = vmor %vm1097, %vm1098
        %v1100 = vsel %vm1099, %v1092, %v1096
        %v1101 = vand.u32 2147483647, %v894
        %vm1102 = vcmp.eq.f32.partialorder %v1101, 8.507059e+37
        %v1103 = vand.u32 %v894, 2147483648
        %v1104 = vor.u32 1.1754944e-38, %v1103
        %v1105 = vsel %vm1102, %v1104, %v1100
        %v1106 = vmul.f32 1.0, %v1105
        %v1107 = vrcp.pop %v895
        %v1108 = vmul.f32 %v895, %v1107
        %v1109 = vsub.f32 1.0, %v1108
        %v1110 = vmul.f32 %v1107, %v1109
        %v1111 = vadd.f32 %v1107, %v1110
        %vm1112 = vweird.f32 %v895
        %vm1113 = vweird.f32 %v1107
        %vm1114 = vmor %vm1112, %vm1113
        %v1115 = vsel %vm1114, %v1107, %v1111
        %v1116 = vand.u32 2147483647, %v895
        %vm1117 = vcmp.eq.f32.partialorder %v1116, 8.507059e+37
        %v1118 = vand.u32 %v895, 2147483648
        %v1119 = vor.u32 1.1754944e-38, %v1118
        %v1120 = vsel %vm1117, %v1119, %v1115
        %v1121 = vmul.f32 1.0, %v1120
        %v1122 = vrcp.pop %v896
        %v1123 = vmul.f32 %v896, %v1122
        %v1124 = vsub.f32 1.0, %v1123
        %v1125 = vmul.f32 %v1122, %v1124
        %v1126 = vadd.f32 %v1122, %v1125
        %vm1127 = vweird.f32 %v896
        %vm1128 = vweird.f32 %v1122
        %vm1129 = vmor %vm1127, %vm1128
        %v1130 = vsel %vm1129, %v1122, %v1126
        %v1131 = vand.u32 2147483647, %v896
        %vm1132 = vcmp.eq.f32.partialorder %v1131, 8.507059e+37
        %v1133 = vand.u32 %v896, 2147483648
        %v1134 = vor.u32 1.1754944e-38, %v1133
        %v1135 = vsel %vm1132, %v1134, %v1130
        %v1136 = vmul.f32 1.0, %v1135
        %v1153 = vlaneseq
        %v1154 = vand.u32 %v1153, 127
        %v1155 = vperm.slane %v911, %v1154
        %v1156 = vadd.s32 %v1154, 4294967288
        %v1157 = vperm.slane %v926, %v1156
        %vm1158 = vcmask 130112
        %v1159 = vsel %vm1158, %v1157, %v1155
        %v1160 = vadd.s32 %v1154, 4294967280
        %v1161 = vperm.slane %v941, %v1160
        %vm1162 = vcmask 195712
        %v1163 = vsel %vm1162, %v1161, %v1159
        %v1164 = vadd.s32 %v1154, 4294967272
        %v1165 = vperm.slane %v956, %v1164
        %vm1166 = vcmask 261312
        %v1167 = vsel %vm1166, %v1165, %v1163
        %v1168 = vadd.s32 %v1154, 4294967264
        %v1169 = vperm.slane %v971, %v1168
        %vm1170 = vcmask 326912
        %v1171 = vsel %vm1170, %v1169, %v1167
        %v1172 = vadd.s32 %v1154, 4294967256
        %v1173 = vperm.slane %v986, %v1172
        %vm1174 = vcmask 392512
        %v1175 = vsel %vm1174, %v1173, %v1171
        %v1176 = vadd.s32 %v1154, 4294967248
        %v1177 = vperm.slane %v1001, %v1176
        %vm1178 = vcmask 458112
        %v1179 = vsel %vm1178, %v1177, %v1175
        %v1180 = vadd.s32 %v1154, 4294967240
        %v1181 = vperm.slane %v1016, %v1180
        %vm1182 = vcmask 523712
        %v1183 = vsel %vm1182, %v1181, %v1179
        %v1184 = vadd.s32 %v1154, 4294967232
        %v1185 = vperm.slane %v1031, %v1184
        %vm1186 = vcmask 589312
        %v1187 = vsel %vm1186, %v1185, %v1183
        %v1188 = vadd.s32 %v1154, 4294967224
        %v1189 = vperm.slane %v1046, %v1188
        %vm1190 = vcmask 654912
        %v1191 = vsel %vm1190, %v1189, %v1187
        %v1192 = vadd.s32 %v1154, 4294967216
        %v1193 = vperm.slane %v1061, %v1192
        %vm1194 = vcmask 720512
        %v1195 = vsel %vm1194, %v1193, %v1191
        %v1196 = vadd.s32 %v1154, 4294967208
        %v1197 = vperm.slane %v1076, %v1196
        %vm1198 = vcmask 786112
        %v1199 = vsel %vm1198, %v1197, %v1195
        %v1200 = vadd.s32 %v1154, 4294967200
        %v1201 = vperm.slane %v1091, %v1200
        %vm1202 = vcmask 851712
        %v1203 = vsel %vm1202, %v1201, %v1199
        %v1204 = vadd.s32 %v1154, 4294967192
        %v1205 = vperm.slane %v1106, %v1204
        %vm1206 = vcmask 917312
        %v1207 = vsel %vm1206, %v1205, %v1203
        %v1208 = vadd.s32 %v1154, 4294967184
        %v1209 = vperm.slane %v1121, %v1208
        %vm1210 = vcmask 982912
        %v1211 = vsel %vm1210, %v1209, %v1207
        %v1212 = vadd.s32 %v1154, 4294967176
        %v1213 = vperm.slane %v1136, %v1212
        %vm1214 = vcmask 1048512
        %v1215 = vsel %vm1214, %v1213, %v1211
        %1217 = vst [vmem:[%s230] sm:$0x1] %v1215
        %s1218 = sand.u32 %s138, 1
        %s1219 = scalar_lea.sflag [#allocation4], %s1218
        %s1220 = sand.u32 %s138, 1
        %s1221 = scalar_lea.vmem [#allocation3], %s1220
        // Predicated region
        $region41: #{tpu_custom_call.1} parent=39 // pred_check
          %p1222 = pneg %p148
        $region42: #{tpu_custom_call.1} parent=39 // pred_check_branch
          %1224 = sbr.rel (%p1222) target = $region44
        $region43: #{tpu_custom_call.1} parent=39 // pred_region
          %1226 = vsyncadd %s1219, 0
          %s1227 = scalar_lea.hbm %s5, %s20
          %s1229 = sshll.u32 %s1221, 4
          %s1230 = int_to_ptr.vmem [resolvable:$true] %s1229
          %s1231 = sshll.u32 %s1227, 4
          %s1232 = int_to_ptr.hbm [resolvable:$true] %s1231
          %1234 = dma.vmem_to_hbm [thread:$0]  %s1230, 16, %s1232, %s1219
        $region44: #{tpu_custom_call.1} parent=39 // pred_fallthru
          _
      $region40: #{tpu_custom_call.1} parent=5 // pred_fallthru
        _
      %p1235 = scmp.le.s32.totalorder 2, %s15
      // Predicated region
      $region45: #{tpu_custom_call.1} parent=5 // pred_check
        %p1236 = pneg %p1235
      $region46: #{tpu_custom_call.1} parent=5 // pred_check_branch
        %1238 = sbr.rel (%p1236) target = $region48
      $region47: #{tpu_custom_call.1} parent=5 // pred_region
        %s1239 = ssub.s32 %s15, 2
        // Predicated region
        $region49: #{tpu_custom_call.1} parent=47 // pred_check
          %p1240 = pneg %p154
        $region50: #{tpu_custom_call.1} parent=47 // pred_check_branch
          %1242 = sbr.rel (%p1240) target = $region52
        $region51: #{tpu_custom_call.1} parent=47 // pred_region
          %s1243 = sand.u32 %s139, 1
          %s1244 = scalar_lea.sflag [#allocation4], %s1243
          %s1245 = sand.u32 %s139, 1
          %s1246 = scalar_lea.vmem [#allocation3], %s1245
          %1248 = dma.done %s1244, 16
        $region52: #{tpu_custom_call.1} parent=47 // pred_fallthru
          _
      $region48: #{tpu_custom_call.1} parent=5 // pred_fallthru
        _
    $region6: #{tpu_custom_call.1} parent=1 // loop_footer
      %s19 = sadd.s32 1, %s15
    $region7: #{tpu_custom_call.1} parent=1 // loop_footer_branch
      %14 = sbr.rel target = $region3
    $region8: #{tpu_custom_call.1} parent=1 // loop_exit
      _
    %1249 = vsyncpa [#allocation4], 1
    %s1250 = scalar_lea.sflag [#allocation4], 1
    %1251 = vsyncpa %s1250, 1

</llo_original>
